<compile_context>
chip_gen: v5e
topology: v5e:2x2
jax: 0.10.0
libtpu: 0.0.40
codegen_flags: <defaults>
</compile_context>

<pallas_src>
from functools import partial

import jax
import jax.numpy as jnp
from jax import lax
from jax.experimental import pallas as pl
from jax.experimental.pallas import tpu as pltpu

LANE = 128
SUBLANE = 8


def rnn_classifier_kernel(tok_ref, emb_ref, wih_ref, whh_ref, brnn_ref,
                          wout_ref, bout_ref, out_ref, *, T, Bt):
    """One batch tile: fused embedding gather, hoisted input proj, unrolled RNN, head."""
    Vp, D = emb_ref.shape          # vocab padded to 128, hidden dim
    TB = T * Bt

    # --- Fused embedding lookup: one-hot(tokens) @ table (MXU, no XLA gather). ---
    # Vocab is padded to a full 128-lane width -> unmasked compare + one MXU push.
    tok = tok_ref[...]                                                 # (TB, 1) int32
    iota = lax.broadcasted_iota(jnp.int32, (TB, Vp), 1)                # (TB, Vp)
    onehot = (tok == iota).astype(jnp.bfloat16)                        # (TB, Vp)
    x = jnp.dot(onehot, emb_ref[...],
                preferred_element_type=jnp.float32).astype(jnp.bfloat16)   # (TB, D)

    # --- Hoisted input projection: one big matmul + bias, off the serial path. ---
    pre = jnp.dot(x, wih_ref[...],
                  preferred_element_type=jnp.float32) + brnn_ref[...]  # (TB, D) f32

    # --- Recurrence: only h @ W_hh^T remains on the critical path. Fully unrolled.
    # TODO(synk): on v5e/v6e this could keep W_hh resident in the MXU via
    # pltpu.matmul_push_rhs / matmul_acc_lhs to shave the per-step weight pushes.
    whh = whh_ref[...]                                                 # (D, D) bf16
    h = jnp.zeros((Bt, D), dtype=jnp.float32)
    for t in range(T):                                                 # static unroll
        pre_t = pre[t * Bt:(t + 1) * Bt, :]                            # (Bt, D) static slice
        h = jnp.tanh(pre_t + jnp.dot(h.astype(jnp.bfloat16), whh,
                                     preferred_element_type=jnp.float32))

    # --- Final linear layer: lane-dense (C padded to 128) -> unmasked store. ---
    out_ref[...] = (jnp.dot(h.astype(jnp.bfloat16), wout_ref[...],
                            preferred_element_type=jnp.float32)
                    + bout_ref[...])                                   # (Bt, 128)


def prepare_params(params):
    """ONE-TIME conversion of PyTorch-layout params into kernel-ready arrays.

    Done once when the model is created, not per forward call (transposes, bias sum,
    vocab/class padding and bf16 casts all happen here).
    """
    emb, w_ih, w_hh = params["embedding"], params["w_ih"], params["w_hh"]
    b_ih, b_hh = params["b_ih"], params["b_hh"]
    w_out, b_out = params["w_out"], params["b_out"]

    V1, D = emb.shape              # V+1 rows (row 0 = padding)
    C = w_out.shape[0]
    Vp = pl.cdiv(V1, LANE) * LANE  # vocab padded to a full lane width
    Cp = pl.cdiv(C, LANE) * LANE   # class axis padded to a full lane width

    kparams = {
        # zero rows for padded vocab ids; in-range-but-unused ids also map to zero.
        "emb": jnp.zeros((Vp, D), jnp.bfloat16).at[:V1].set(emb.astype(jnp.bfloat16)),
        "wih_t": w_ih.T.astype(jnp.bfloat16),                       # (D, D)
        "whh_t": w_hh.T.astype(jnp.bfloat16),                       # (D, D)
        "brnn": (b_ih + b_hh).reshape(1, D).astype(jnp.float32),    # (1, D)
        "wout_t": jnp.zeros((D, Cp), jnp.bfloat16).at[:, :C].set(
            w_out.T.astype(jnp.bfloat16)),                          # (D, 128)
        "bout": jnp.zeros((1, Cp), jnp.float32).at[:, :C].set(
            b_out.reshape(1, C).astype(jnp.float32)),               # (1, 128)
    }
    return kparams, C


def _choose_batch_tile(B):
    # Small batches: one tile padded to a sublane multiple.  Large batches: 256-row
    # tiles so the parallel grid axis can shard across TensorCores (v7x).
    Bp = pl.cdiv(B, SUBLANE) * SUBLANE
    return Bp if Bp <= 256 else 256


def torch_model_forward(tokens, kparams, num_classes):
    """Forward pass equivalent to TorchModel.forward(x) (no labels -> returns logits)."""
    emb = kparams["emb"]
    Vp, D = emb.shape
    Cp = kparams["wout_t"].shape[1]
    B, T = tokens.shape

    Bt = _choose_batch_tile(B)
    num_tiles = pl.cdiv(B, Bt)
    B_pad = num_tiles * Bt

    # Tiny per-call token relayout: pad batch with padding_idx 0 rows, then lay out
    # each batch tile time-major (row = t*Bt + b_local).  4*T*B_pad bytes total.
    tok = tokens.astype(jnp.int32)
    if B_pad != B:
        tok = jnp.pad(tok, ((0, B_pad - B), (0, 0)))
    tok_tiled = (tok.T.reshape(T, num_tiles, Bt)
                      .transpose(1, 0, 2)
                      .reshape(num_tiles, T * Bt, 1))

    def full(shape):  # whole array resident in VMEM; constant index_map => DMA'd once
        return pl.BlockSpec(shape, lambda i, s=shape: (0,) * len(s))

    logits_pad = pl.pallas_call(
        partial(rnn_classifier_kernel, T=T, Bt=Bt),
        out_shape=jax.ShapeDtypeStruct((B_pad, Cp), jnp.float32),
        grid=(num_tiles,),
        in_specs=[
            pl.BlockSpec((None, T * Bt, 1), lambda i: (i, 0, 0)),   # per-tile tokens
            full((Vp, D)),      # embedding table (bf16)
            full((D, D)),       # W_ih^T (bf16)
            full((D, D)),       # W_hh^T (bf16)
            full((1, D)),       # b_ih + b_hh (f32)
            full((D, Cp)),      # W_out^T padded (bf16)
            full((1, Cp)),      # b_out padded (f32)
        ],
        out_specs=pl.BlockSpec((Bt, Cp), lambda i: (i, 0)),
        compiler_params=pltpu.CompilerParams(
            dimension_semantics=("parallel",)),
    )(tok_tiled, emb, kparams["wih_t"], kparams["whh_t"], kparams["brnn"],
      kparams["wout_t"], kparams["bout"])

    return logits_pad[:B, :num_classes]                              # (B, C) == y_pred


def _reference_forward(tokens, params):
    """Pure-JAX f32 reference reproducing the PyTorch semantics (for sanity check)."""
    emb = params["embedding"]
    x = jnp.take(emb, tokens, axis=0)               # (B, T, D)
    B, T, D = x.shape
    h = jnp.zeros((B, D), jnp.float32)
    for t in range(T):
        h = jnp.tanh(x[:, t, :] @ params["w_ih"].T + params["b_ih"]
                     + h @ params["w_hh"].T + params["b_hh"])
    return h @ params["w_out"].T + params["b_out"]


def init_params(key, vocab_size, input_dim, sentence_length):
    """Deterministic synthetic parameter init matching the PyTorch module's shapes."""
    D = input_dim
    C = sentence_length + 1
    ks = jax.random.split(key, 7)
    emb = jax.random.normal(ks[0], (vocab_size + 1, D), jnp.float32) * 0.1
    emb = emb.at[0].set(0.0)                        # padding_idx=0
    scale = 1.0 / jnp.sqrt(D)
    return {
        "embedding": emb,
        "w_ih": jax.random.uniform(ks[1], (D, D), jnp.float32, -scale, scale),
        "w_hh": jax.random.uniform(ks[2], (D, D), jnp.float32, -scale, scale),
        "b_ih": jax.random.uniform(ks[3], (D,), jnp.float32, -scale, scale),
        "b_hh": jax.random.uniform(ks[4], (D,), jnp.float32, -scale, scale),
        "w_out": jax.random.uniform(ks[5], (C, D), jnp.float32, -scale, scale),
        "b_out": jax.random.uniform(ks[6], (C,), jnp.float32, -scale, scale),
    }


if __name__ == "__main__":
    # Small, module-consistent shapes: vocab of 26 chars, seq len 8, hidden/input dim 32.
    VOCAB_SIZE = 26          # len(vocab); embedding has VOCAB_SIZE + 1 rows
    SENTENCE_LENGTH = 8      # output classes = SENTENCE_LENGTH + 1 = 9
    INPUT_DIM = 32
    BATCH = 2

    key = jax.random.PRNGKey(0)
    pkey, tkey = jax.random.split(key)
    params = init_params(pkey, VOCAB_SIZE, INPUT_DIM, SENTENCE_LENGTH)
    kparams, num_classes = prepare_params(params)   # one-time prep, NOT per call
    tokens = jax.random.randint(tkey, (BATCH, SENTENCE_LENGTH), 0, VOCAB_SIZE + 1,
                                dtype=jnp.int32)

    fwd = jax.jit(torch_model_forward, static_argnames="num_classes")
    logits = fwd(tokens, kparams, num_classes=num_classes)
    logits = jax.block_until_ready(logits)

    # Sanity-check against a pure-JAX f32 reference of the PyTorch forward.
    # Tolerance relaxed because matmul operands are bf16 in the kernel (f32 accum).
    ref = _reference_forward(tokens, params)
    assert logits.shape == (BATCH, SENTENCE_LENGTH + 1), logits.shape
    max_err = float(jnp.max(jnp.abs(logits - ref)))
    assert jnp.allclose(logits, ref, atol=2e-2, rtol=2e-2), (
        f"mismatch vs reference, max abs err = {max_err}")

    print("KERNEL_OK")
</pallas_src>

<mosaic_0001>
module attributes {stable_mosaic.version = 11 : i64} {
  func.func @rnn_classifier_kernel(%arg0: i32, %arg1: memref<1x64x1xi32, #tpu.memory_space<vmem>>, %arg2: memref<128x32xbf16, #tpu.memory_space<vmem>>, %arg3: memref<32x32xbf16, #tpu.memory_space<vmem>>, %arg4: memref<32x32xbf16, #tpu.memory_space<vmem>>, %arg5: memref<1x32xf32, #tpu.memory_space<vmem>>, %arg6: memref<32x128xbf16, #tpu.memory_space<vmem>>, %arg7: memref<1x128xf32, #tpu.memory_space<vmem>>, %arg8: memref<8x128xf32, #tpu.memory_space<vmem>>) attributes {dimension_semantics = [#tpu.dimension_semantics<parallel>], iteration_bounds = array<i64: 1>, scalar_prefetch = 0 : i64, scratch_operands = 0 : i64, tpu.core_type = #tpu.core_type<tc>, window_params = [{transform_indices = @transform_0, window_bounds = array<i64: 1, 64, 1>}, {pipeline_mode = #tpu.pipeline_mode<synchronous>, transform_indices = @transform_1, window_bounds = array<i64: 128, 32>}, {pipeline_mode = #tpu.pipeline_mode<synchronous>, transform_indices = @transform_2, window_bounds = array<i64: 32, 32>}, {pipeline_mode = #tpu.pipeline_mode<synchronous>, transform_indices = @transform_3, window_bounds = array<i64: 32, 32>}, {pipeline_mode = #tpu.pipeline_mode<synchronous>, transform_indices = @transform_4, window_bounds = array<i64: 1, 32>}, {pipeline_mode = #tpu.pipeline_mode<synchronous>, transform_indices = @transform_5, window_bounds = array<i64: 32, 128>}, {pipeline_mode = #tpu.pipeline_mode<synchronous>, transform_indices = @transform_6, window_bounds = array<i64: 1, 128>}, {transform_indices = @transform_7, window_bounds = array<i64: 8, 128>}]} {
    %c0 = arith.constant 0 : index
    %c0_0 = arith.constant 0 : index
    %c0_1 = arith.constant 0 : index
    %0 = vector.load %arg1[%c0, %c0_0, %c0_1] : memref<1x64x1xi32, #tpu.memory_space<vmem>>, vector<1x64x1xi32>
    %1 = vector.shape_cast %0 : vector<1x64x1xi32> to vector<64x1xi32>
    %2 = tpu.iota {dimensions = array<i32: 1>} : vector<64x128xi32>
    %3 = vector.broadcast %1 : vector<64x1xi32> to vector<64x128xi32>
    %4 = arith.cmpi eq, %3, %2 : vector<64x128xi32>
    %5 = arith.extui %4 : vector<64x128xi1> to vector<64x128xi32>
    %6 = arith.sitofp %5 : vector<64x128xi32> to vector<64x128xf32>
    %7 = arith.truncf %6 : vector<64x128xf32> to vector<64x128xbf16>
    %c0_2 = arith.constant 0 : index
    %c0_3 = arith.constant 0 : index
    %8 = vector.load %arg2[%c0_2, %c0_3] : memref<128x32xbf16, #tpu.memory_space<vmem>>, vector<128x32xbf16>
    %cst = arith.constant dense<0.000000e+00> : vector<64x32xf32>
    %9 = tpu.matmul %7, %8, %cst {dimension_numbers = #tpu.dot_dimension_numbers<[1], [0], [0], [1], [0, 0, 1, 1], [], []>} : vector<64x128xbf16>, vector<128x32xbf16>, vector<64x32xf32> -> vector<64x32xf32>
    %10 = arith.truncf %9 : vector<64x32xf32> to vector<64x32xbf16>
    %c0_4 = arith.constant 0 : index
    %c0_5 = arith.constant 0 : index
    %11 = vector.load %arg3[%c0_4, %c0_5] : memref<32x32xbf16, #tpu.memory_space<vmem>>, vector<32x32xbf16>
    %cst_6 = arith.constant dense<0.000000e+00> : vector<64x32xf32>
    %12 = tpu.matmul %10, %11, %cst_6 {dimension_numbers = #tpu.dot_dimension_numbers<[1], [0], [0], [1], [0, 0, 1, 1], [], []>} : vector<64x32xbf16>, vector<32x32xbf16>, vector<64x32xf32> -> vector<64x32xf32>
    %c0_7 = arith.constant 0 : index
    %c0_8 = arith.constant 0 : index
    %13 = vector.load %arg5[%c0_7, %c0_8] : memref<1x32xf32, #tpu.memory_space<vmem>>, vector<1x32xf32>
    %14 = vector.broadcast %13 : vector<1x32xf32> to vector<64x32xf32>
    %15 = arith.addf %12, %14 : vector<64x32xf32>
    %c0_9 = arith.constant 0 : index
    %c0_10 = arith.constant 0 : index
    %16 = vector.load %arg4[%c0_9, %c0_10] : memref<32x32xbf16, #tpu.memory_space<vmem>>, vector<32x32xbf16>
    %cst_11 = arith.constant 0.000000e+00 : f32
    %17 = vector.broadcast %cst_11 : f32 to vector<8x32xf32>
    %18 = vector.extract_strided_slice %15 {offsets = [0, 0], sizes = [8, 32], strides = [1, 1]} : vector<64x32xf32> to vector<8x32xf32>
    %19 = arith.truncf %17 : vector<8x32xf32> to vector<8x32xbf16>
    %cst_12 = arith.constant dense<0.000000e+00> : vector<8x32xf32>
    %20 = tpu.matmul %19, %16, %cst_12 {dimension_numbers = #tpu.dot_dimension_numbers<[1], [0], [0], [1], [0, 0, 1, 1], [], []>} : vector<8x32xbf16>, vector<32x32xbf16>, vector<8x32xf32> -> vector<8x32xf32>
    %21 = arith.addf %18, %20 : vector<8x32xf32>
    %22 = math.tanh %21 : vector<8x32xf32>
    %23 = vector.extract_strided_slice %15 {offsets = [8, 0], sizes = [8, 32], strides = [1, 1]} : vector<64x32xf32> to vector<8x32xf32>
    %24 = arith.truncf %22 : vector<8x32xf32> to vector<8x32xbf16>
    %cst_13 = arith.constant dense<0.000000e+00> : vector<8x32xf32>
    %25 = tpu.matmul %24, %16, %cst_13 {dimension_numbers = #tpu.dot_dimension_numbers<[1], [0], [0], [1], [0, 0, 1, 1], [], []>} : vector<8x32xbf16>, vector<32x32xbf16>, vector<8x32xf32> -> vector<8x32xf32>
    %26 = arith.addf %23, %25 : vector<8x32xf32>
    %27 = math.tanh %26 : vector<8x32xf32>
    %28 = vector.extract_strided_slice %15 {offsets = [16, 0], sizes = [8, 32], strides = [1, 1]} : vector<64x32xf32> to vector<8x32xf32>
    %29 = arith.truncf %27 : vector<8x32xf32> to vector<8x32xbf16>
    %cst_14 = arith.constant dense<0.000000e+00> : vector<8x32xf32>
    %30 = tpu.matmul %29, %16, %cst_14 {dimension_numbers = #tpu.dot_dimension_numbers<[1], [0], [0], [1], [0, 0, 1, 1], [], []>} : vector<8x32xbf16>, vector<32x32xbf16>, vector<8x32xf32> -> vector<8x32xf32>
    %31 = arith.addf %28, %30 : vector<8x32xf32>
    %32 = math.tanh %31 : vector<8x32xf32>
    %33 = vector.extract_strided_slice %15 {offsets = [24, 0], sizes = [8, 32], strides = [1, 1]} : vector<64x32xf32> to vector<8x32xf32>
    %34 = arith.truncf %32 : vector<8x32xf32> to vector<8x32xbf16>
    %cst_15 = arith.constant dense<0.000000e+00> : vector<8x32xf32>
    %35 = tpu.matmul %34, %16, %cst_15 {dimension_numbers = #tpu.dot_dimension_numbers<[1], [0], [0], [1], [0, 0, 1, 1], [], []>} : vector<8x32xbf16>, vector<32x32xbf16>, vector<8x32xf32> -> vector<8x32xf32>
    %36 = arith.addf %33, %35 : vector<8x32xf32>
    %37 = math.tanh %36 : vector<8x32xf32>
    %38 = vector.extract_strided_slice %15 {offsets = [32, 0], sizes = [8, 32], strides = [1, 1]} : vector<64x32xf32> to vector<8x32xf32>
    %39 = arith.truncf %37 : vector<8x32xf32> to vector<8x32xbf16>
    %cst_16 = arith.constant dense<0.000000e+00> : vector<8x32xf32>
    %40 = tpu.matmul %39, %16, %cst_16 {dimension_numbers = #tpu.dot_dimension_numbers<[1], [0], [0], [1], [0, 0, 1, 1], [], []>} : vector<8x32xbf16>, vector<32x32xbf16>, vector<8x32xf32> -> vector<8x32xf32>
    %41 = arith.addf %38, %40 : vector<8x32xf32>
    %42 = math.tanh %41 : vector<8x32xf32>
    %43 = vector.extract_strided_slice %15 {offsets = [40, 0], sizes = [8, 32], strides = [1, 1]} : vector<64x32xf32> to vector<8x32xf32>
    %44 = arith.truncf %42 : vector<8x32xf32> to vector<8x32xbf16>
    %cst_17 = arith.constant dense<0.000000e+00> : vector<8x32xf32>
    %45 = tpu.matmul %44, %16, %cst_17 {dimension_numbers = #tpu.dot_dimension_numbers<[1], [0], [0], [1], [0, 0, 1, 1], [], []>} : vector<8x32xbf16>, vector<32x32xbf16>, vector<8x32xf32> -> vector<8x32xf32>
    %46 = arith.addf %43, %45 : vector<8x32xf32>
    %47 = math.tanh %46 : vector<8x32xf32>
    %48 = vector.extract_strided_slice %15 {offsets = [48, 0], sizes = [8, 32], strides = [1, 1]} : vector<64x32xf32> to vector<8x32xf32>
    %49 = arith.truncf %47 : vector<8x32xf32> to vector<8x32xbf16>
    %cst_18 = arith.constant dense<0.000000e+00> : vector<8x32xf32>
    %50 = tpu.matmul %49, %16, %cst_18 {dimension_numbers = #tpu.dot_dimension_numbers<[1], [0], [0], [1], [0, 0, 1, 1], [], []>} : vector<8x32xbf16>, vector<32x32xbf16>, vector<8x32xf32> -> vector<8x32xf32>
    %51 = arith.addf %48, %50 : vector<8x32xf32>
    %52 = math.tanh %51 : vector<8x32xf32>
    %53 = vector.extract_strided_slice %15 {offsets = [56, 0], sizes = [8, 32], strides = [1, 1]} : vector<64x32xf32> to vector<8x32xf32>
    %54 = arith.truncf %52 : vector<8x32xf32> to vector<8x32xbf16>
    %cst_19 = arith.constant dense<0.000000e+00> : vector<8x32xf32>
    %55 = tpu.matmul %54, %16, %cst_19 {dimension_numbers = #tpu.dot_dimension_numbers<[1], [0], [0], [1], [0, 0, 1, 1], [], []>} : vector<8x32xbf16>, vector<32x32xbf16>, vector<8x32xf32> -> vector<8x32xf32>
    %56 = arith.addf %53, %55 : vector<8x32xf32>
    %57 = math.tanh %56 : vector<8x32xf32>
    %58 = arith.truncf %57 : vector<8x32xf32> to vector<8x32xbf16>
    %c0_20 = arith.constant 0 : index
    %c0_21 = arith.constant 0 : index
    %59 = vector.load %arg6[%c0_20, %c0_21] : memref<32x128xbf16, #tpu.memory_space<vmem>>, vector<32x128xbf16>
    %cst_22 = arith.constant dense<0.000000e+00> : vector<8x128xf32>
    %60 = tpu.matmul %58, %59, %cst_22 {dimension_numbers = #tpu.dot_dimension_numbers<[1], [0], [0], [1], [0, 0, 1, 1], [], []>} : vector<8x32xbf16>, vector<32x128xbf16>, vector<8x128xf32> -> vector<8x128xf32>
    %c0_23 = arith.constant 0 : index
    %c0_24 = arith.constant 0 : index
    %61 = vector.load %arg7[%c0_23, %c0_24] : memref<1x128xf32, #tpu.memory_space<vmem>>, vector<1x128xf32>
    %62 = vector.broadcast %61 : vector<1x128xf32> to vector<8x128xf32>
    %63 = arith.addf %60, %62 : vector<8x128xf32>
    %c0_25 = arith.constant 0 : index
    %c0_26 = arith.constant 0 : index
    %64 = vector.load %arg8[%c0_25, %c0_26] : memref<8x128xf32, #tpu.memory_space<vmem>>, vector<8x128xf32>
    tpu.vector_store %arg8[%c0_25, %c0_26], %63 {strides = array<i32>} : memref<8x128xf32, #tpu.memory_space<vmem>>, vector<8x128xf32>,
    return
  }
  func.func @transform_0(%arg0: i32) -> (i32, i32, i32) {
    %c0_i32 = arith.constant 0 : i32
    %c0_i32_0 = arith.constant 0 : i32
    %c0_i32_1 = arith.constant 0 : i32
    return %arg0, %c0_i32, %c0_i32_0 : i32, i32, i32
  }
  func.func @transform_1(%arg0: i32) -> (i32, i32) {
    %c0_i32 = arith.constant 0 : i32
    %c0_i32_0 = arith.constant 0 : i32
    %c0_i32_1 = arith.constant 0 : i32
    return %c0_i32, %c0_i32_0 : i32, i32
  }
  func.func @transform_2(%arg0: i32) -> (i32, i32) {
    %c0_i32 = arith.constant 0 : i32
    %c0_i32_0 = arith.constant 0 : i32
    %c0_i32_1 = arith.constant 0 : i32
    return %c0_i32, %c0_i32_0 : i32, i32
  }
  func.func @transform_3(%arg0: i32) -> (i32, i32) {
    %c0_i32 = arith.constant 0 : i32
    %c0_i32_0 = arith.constant 0 : i32
    %c0_i32_1 = arith.constant 0 : i32
    return %c0_i32, %c0_i32_0 : i32, i32
  }
  func.func @transform_4(%arg0: i32) -> (i32, i32) {
    %c0_i32 = arith.constant 0 : i32
    %c0_i32_0 = arith.constant 0 : i32
    %c0_i32_1 = arith.constant 0 : i32
    return %c0_i32, %c0_i32_0 : i32, i32
  }
  func.func @transform_5(%arg0: i32) -> (i32, i32) {
    %c0_i32 = arith.constant 0 : i32
    %c0_i32_0 = arith.constant 0 : i32
    %c0_i32_1 = arith.constant 0 : i32
    return %c0_i32, %c0_i32_0 : i32, i32
  }
  func.func @transform_6(%arg0: i32) -> (i32, i32) {
    %c0_i32 = arith.constant 0 : i32
    %c0_i32_0 = arith.constant 0 : i32
    %c0_i32_1 = arith.constant 0 : i32
    return %c0_i32, %c0_i32_0 : i32, i32
  }
  func.func @transform_7(%arg0: i32) -> (i32, i32) {
    %c0_i32 = arith.constant 0 : i32
    %c0_i32_0 = arith.constant 0 : i32
    return %arg0, %c0_i32 : i32, i32
  }
}

</mosaic_0001>

<llo_original>
// kernel: torch_model_forward.1
$region0: #{torch_model_forward.1}
  #allocation0 [shape = 'u32[]', space=smem, size = 0x4, offset = 0x4, fixed_abs, tag = 'smem constant byte address 0x4 - core index']
  #allocation1 [shape = 'u32[72,128]{1,0:T(1,128)}', space=vmem, size = 0x9000, scoped, tag = 'internal scratch']
  %s0 = inlined_call_operand.vmem [shape: s32[1,64,1], index: 0, kind: input, shape index: {}]
  %s1 = inlined_call_operand.vmem [shape: bf16[128,32], index: 1, kind: input, shape index: {}]
  %s2 = inlined_call_operand.vmem [shape: bf16[32,32], index: 2, kind: input, shape index: {}]
  %s3 = inlined_call_operand.vmem [shape: bf16[32,32], index: 3, kind: input, shape index: {}]
  %s4 = inlined_call_operand.vmem [shape: f32[1,32], index: 4, kind: input, shape index: {}]
  %s5 = inlined_call_operand.vmem [shape: bf16[32,128], index: 5, kind: input, shape index: {}]
  %s6 = inlined_call_operand.vmem [shape: f32[1,128], index: 6, kind: input, shape index: {}]
  %s7 = inlined_call_operand.vmem [shape: f32[8,128], index: 7, kind: output, shape index: {}]
  %s8 = sld [smem:[#allocation0]]
  $region38: #{torch_model_forward.1} parent=0
    _
  %s10 = ssub.s32 1, %s8
  %s11 = scalar_select 0, %s10, %s8
  // Predicated region
  $region2: #{torch_model_forward.1} parent=0 // pred_check
    _
  $region3: #{torch_model_forward.1} parent=0 // pred_check_branch
    %13 = sbr.rel (0) target = $region5
  $region4: #{torch_model_forward.1} parent=0 // pred_region
    _
  $region5: #{torch_model_forward.1} parent=0 // pred_fallthru
    _
  // Predicated region
  $region6: #{torch_model_forward.1} parent=0 // pred_check
    _
  $region7: #{torch_model_forward.1} parent=0 // pred_check_branch
    %15 = sbr.rel (0) target = $region9
  $region8: #{torch_model_forward.1} parent=0 // pred_region
    _
  $region9: #{torch_model_forward.1} parent=0 // pred_fallthru
    _
  // Predicated region
  $region10: #{torch_model_forward.1} parent=0 // pred_check
    _
  $region11: #{torch_model_forward.1} parent=0 // pred_check_branch
    %17 = sbr.rel (0) target = $region13
  $region12: #{torch_model_forward.1} parent=0 // pred_region
    _
  $region13: #{torch_model_forward.1} parent=0 // pred_fallthru
    _
  // Predicated region
  $region14: #{torch_model_forward.1} parent=0 // pred_check
    _
  $region15: #{torch_model_forward.1} parent=0 // pred_check_branch
    %19 = sbr.rel (0) target = $region17
  $region16: #{torch_model_forward.1} parent=0 // pred_region
    _
  $region17: #{torch_model_forward.1} parent=0 // pred_fallthru
    _
  // Predicated region
  $region18: #{torch_model_forward.1} parent=0 // pred_check
    _
  $region19: #{torch_model_forward.1} parent=0 // pred_check_branch
    %21 = sbr.rel (0) target = $region21
  $region20: #{torch_model_forward.1} parent=0 // pred_region
    _
  $region21: #{torch_model_forward.1} parent=0 // pred_fallthru
    _
  // Predicated region
  $region22: #{torch_model_forward.1} parent=0 // pred_check
    _
  $region23: #{torch_model_forward.1} parent=0 // pred_check_branch
    %23 = sbr.rel (0) target = $region25
  $region24: #{torch_model_forward.1} parent=0 // pred_region
    _
  $region25: #{torch_model_forward.1} parent=0 // pred_fallthru
    _
  // Predicated region
  $region26: #{torch_model_forward.1} parent=0 // pred_check
    _
  $region27: #{torch_model_forward.1} parent=0 // pred_check_branch
    %25 = sbr.rel (0) target = $region29
  $region28: #{torch_model_forward.1} parent=0 // pred_region
    _
  $region29: #{torch_model_forward.1} parent=0 // pred_fallthru
    _
  %v27 = vld [vmem:[%s0] sm:$0xff]
  %v28 = vld [vmem:[%s0 + $0x8] sm:$0xff]
  %v29 = vld [vmem:[%s0 + $0x10] sm:$0xff]
  %v30 = vld [vmem:[%s0 + $0x18] sm:$0xff]
  %v31 = vld [vmem:[%s0 + $0x20] sm:$0xff]
  %v32 = vld [vmem:[%s0 + $0x28] sm:$0xff]
  %v33 = vld [vmem:[%s0 + $0x30] sm:$0xff]
  %v34 = vld [vmem:[%s0 + $0x38] sm:$0xff]
  %v35 = vlaneseq
  %v36 = vand.u32 %v35, 127
  %37 = vset.pattern.permute.xlu0 0
  %38 = vperm.xlu0 %37, %v27
  %v39 = vpop.permute.xlu0 %38
  %40 = vset.pattern.permute.xlu0 0
  %41 = vperm.xlu0 %40, %v28
  %v42 = vpop.permute.xlu0 %41
  %43 = vset.pattern.permute.xlu0 0
  %44 = vperm.xlu0 %43, %v29
  %v45 = vpop.permute.xlu0 %44
  %46 = vset.pattern.permute.xlu0 0
  %47 = vperm.xlu0 %46, %v30
  %v48 = vpop.permute.xlu0 %47
  %49 = vset.pattern.permute.xlu0 0
  %50 = vperm.xlu0 %49, %v31
  %v51 = vpop.permute.xlu0 %50
  %52 = vset.pattern.permute.xlu0 0
  %53 = vperm.xlu0 %52, %v32
  %v54 = vpop.permute.xlu0 %53
  %55 = vset.pattern.permute.xlu0 0
  %56 = vperm.xlu0 %55, %v33
  %v57 = vpop.permute.xlu0 %56
  %58 = vset.pattern.permute.xlu0 0
  %59 = vperm.xlu0 %58, %v34
  %v60 = vpop.permute.xlu0 %59
  %vm61 = vcmp.eq.s32.totalorder %v39, %v36
  %vm62 = vcmp.eq.s32.totalorder %v42, %v36
  %vm63 = vcmp.eq.s32.totalorder %v45, %v36
  %vm64 = vcmp.eq.s32.totalorder %v48, %v36
  %vm65 = vcmp.eq.s32.totalorder %v51, %v36
  %vm66 = vcmp.eq.s32.totalorder %v54, %v36
  %vm67 = vcmp.eq.s32.totalorder %v57, %v36
  %vm68 = vcmp.eq.s32.totalorder %v60, %v36
  %v69 = vsel %vm61, 1, 0
  %v70 = vsel %vm62, 1, 0
  %v71 = vsel %vm63, 1, 0
  %v72 = vsel %vm64, 1, 0
  %v73 = vsel %vm65, 1, 0
  %v74 = vsel %vm66, 1, 0
  %v75 = vsel %vm67, 1, 0
  %v76 = vsel %vm68, 1, 0
  %v77 = vcvt.s32.f32 %v69
  %v78 = vcvt.s32.f32 %v70
  %v79 = vcvt.s32.f32 %v71
  %v80 = vcvt.s32.f32 %v72
  %v81 = vcvt.s32.f32 %v73
  %v82 = vcvt.s32.f32 %v74
  %v83 = vcvt.s32.f32 %v75
  %v84 = vcvt.s32.f32 %v76
  %v85 = vpack.c.bf16 %v78, %v77
  %v86 = vpack.c.bf16 %v80, %v79
  %v87 = vpack.c.bf16 %v82, %v81
  %v88 = vpack.c.bf16 %v84, %v83
  %v89 = vld [vmem:[%s1] sm:$0xf]
  %v90 = vld [vmem:[%s1 + $0x4] sm:$0xf]
  %v91 = vld [vmem:[%s1 + $0x8] sm:$0xf]
  %v92 = vld [vmem:[%s1 + $0xc] sm:$0xf]
  %v93 = vld [vmem:[%s1 + $0x10] sm:$0xf]
  %v94 = vld [vmem:[%s1 + $0x14] sm:$0xf]
  %v95 = vld [vmem:[%s1 + $0x18] sm:$0xf]
  %v96 = vld [vmem:[%s1 + $0x1c] sm:$0xf]
  %v97 = vld [vmem:[%s1 + $0x20] sm:$0xf]
  %v98 = vld [vmem:[%s1 + $0x24] sm:$0xf]
  %v99 = vld [vmem:[%s1 + $0x28] sm:$0xf]
  %v100 = vld [vmem:[%s1 + $0x2c] sm:$0xf]
  %v101 = vld [vmem:[%s1 + $0x30] sm:$0xf]
  %v102 = vld [vmem:[%s1 + $0x34] sm:$0xf]
  %v103 = vld [vmem:[%s1 + $0x38] sm:$0xf]
  %v104 = vld [vmem:[%s1 + $0x3c] sm:$0xf]
  %v121 = vunpack.c.l.b16 %v89
  %v122 = vunpack.c.l.b16 %v90
  %v123 = vunpack.c.l.b16 %v91
  %v124 = vunpack.c.l.b16 %v92
  %v125 = vunpack.c.l.b16 %v93
  %v126 = vunpack.c.l.b16 %v94
  %v127 = vunpack.c.l.b16 %v95
  %v128 = vunpack.c.l.b16 %v96
  %v129 = vunpack.c.l.b16 %v97
  %v130 = vunpack.c.l.b16 %v98
  %v131 = vunpack.c.l.b16 %v99
  %v132 = vunpack.c.l.b16 %v100
  %v133 = vunpack.c.l.b16 %v101
  %v134 = vunpack.c.l.b16 %v102
  %v135 = vunpack.c.l.b16 %v103
  %v136 = vunpack.c.l.b16 %v104
  %v137 = vpack.c.b16 %v122, %v121
  %v138 = vpack.c.b16 %v124, %v123
  %v139 = vpack.c.b16 %v126, %v125
  %v140 = vpack.c.b16 %v128, %v127
  %v141 = vpack.c.b16 %v130, %v129
  %v142 = vpack.c.b16 %v132, %v131
  %v143 = vpack.c.b16 %v134, %v133
  %v144 = vpack.c.b16 %v136, %v135
  %153 = vmatpush.bf16.msra.mxu0 %v144
  %154 = vmatpush.bf16.msra.mxu0 %v143
  %155 = vmatpush.bf16.msra.mxu0 %v142
  %156 = vmatpush.bf16.msra.mxu0 %v141
  %157 = vmatpush.bf16.msra.mxu0 %v140
  %158 = vmatpush.bf16.msra.mxu0 %v139
  %159 = vmatpush.bf16.msra.mxu0 %v138
  %160 = vmatpush.bf16.msra.mxu0 %v137
  %161 = vmatmul.bf16.gmra.mxu0 %v85
  %v162 = vpop.f32.mrf.mxu0
  %v163 = vadd.f32 0.0, %v162
  %v164 = vpop.f32.mrf.mxu0
  %v165 = vadd.f32 0.0, %v164
  %166 = vmatmul.bf16.gmra.mxu0 %v86
  %v167 = vpop.f32.mrf.mxu0
  %v168 = vadd.f32 0.0, %v167
  %v169 = vpop.f32.mrf.mxu0
  %v170 = vadd.f32 0.0, %v169
  %171 = vmatmul.bf16.gmra.mxu0 %v87
  %v172 = vpop.f32.mrf.mxu0
  %v173 = vadd.f32 0.0, %v172
  %v174 = vpop.f32.mrf.mxu0
  %v175 = vadd.f32 0.0, %v174
  %176 = vmatmul.bf16.gmra.mxu0 %v88
  %v177 = vpop.f32.mrf.mxu0
  %v178 = vadd.f32 0.0, %v177
  %v179 = vpop.f32.mrf.mxu0
  %v180 = vadd.f32 0.0, %v179
  %181 = vdwg.mxu0
  %v182 = vpack.c.bf16 %v165, %v163
  %v183 = vpack.c.bf16 %v170, %v168
  %v184 = vpack.c.bf16 %v175, %v173
  %v185 = vpack.c.bf16 %v180, %v178
  %v186 = vld [vmem:[%s2] sm:$0xf]
  %v187 = vld [vmem:[%s2 + $0x4] sm:$0xf]
  %v188 = vld [vmem:[%s2 + $0x8] sm:$0xf]
  %v189 = vld [vmem:[%s2 + $0xc] sm:$0xf]
  %v190 = vld [vmem:[%s4] sm:$0x1]
  %v192 = vperm.slane %v190, 0
  %v198 = vunpack.c.l.b16 %v186
  %v199 = vunpack.c.l.b16 %v187
  %v200 = vunpack.c.l.b16 %v188
  %v201 = vunpack.c.l.b16 %v189
  %v202 = vpack.c.b16 %v199, %v198
  %v203 = vpack.c.b16 %v201, %v200
  %vm206 = vcmask 261120
  %v208 = vsel %vm206, %v182, 0
  %v211 = vsel %vm206, %v183, 0
  %v214 = vsel %vm206, %v184, 0
  %v217 = vsel %vm206, %v185, 0
  %219 = vmatpush.bf16.msra.mxu0 0
  %220 = vmatpush.bf16.msra.mxu0 0
  %221 = vmatpush.bf16.msra.mxu0 0
  %222 = vmatpush.bf16.msra.mxu0 0
  %223 = vmatpush.bf16.msra.mxu0 0
  %224 = vmatpush.bf16.msra.mxu0 0
  %225 = vmatpush.bf16.msra.mxu0 %v203
  %226 = vmatpush.bf16.msra.mxu0 %v202
  %227 = vmatmul.bf16.gmra.mxu0 %v208
  %v228 = vpop.f32.mrf.mxu0
  %v229 = vadd.f32 %v192, %v228
  %v230 = vpop.f32.mrf.mxu0
  %v231 = vadd.f32 %v192, %v230
  %232 = vmatmul.bf16.gmra.mxu0 %v211
  %v233 = vpop.f32.mrf.mxu0
  %v234 = vadd.f32 %v192, %v233
  %v235 = vpop.f32.mrf.mxu0
  %v236 = vadd.f32 %v192, %v235
  %237 = vmatmul.bf16.gmra.mxu0 %v214
  %v238 = vpop.f32.mrf.mxu0
  %v239 = vadd.f32 %v192, %v238
  %v240 = vpop.f32.mrf.mxu0
  %v241 = vadd.f32 %v192, %v240
  %242 = vmatmul.bf16.gmra.mxu0 %v217
  %v243 = vpop.f32.mrf.mxu0
  %v244 = vadd.f32 %v192, %v243
  %v245 = vpop.f32.mrf.mxu0
  %v246 = vadd.f32 %v192, %v245
  %247 = vdwg.mxu0
  %v248 = vld [vmem:[%s3] sm:$0xf]
  %v249 = vld [vmem:[%s3 + $0x4] sm:$0xf]
  %v250 = vld [vmem:[%s3 + $0x8] sm:$0xf]
  %v251 = vld [vmem:[%s3 + $0xc] sm:$0xf]
  %v256 = vunpack.c.l.b16 %v248
  %v257 = vunpack.c.l.b16 %v249
  %v258 = vunpack.c.l.b16 %v250
  %v259 = vunpack.c.l.b16 %v251
  %v260 = vpack.c.b16 %v257, %v256
  %v261 = vpack.c.b16 %v259, %v258
  %v265 = vsel %vm206, 0, 0
  %267 = vmatpush.bf16.msra.mxu0 0
  %268 = vmatpush.bf16.msra.mxu0 0
  %269 = vmatpush.bf16.msra.mxu0 0
  %270 = vmatpush.bf16.msra.mxu0 0
  %271 = vmatpush.bf16.msra.mxu0 0
  %272 = vmatpush.bf16.msra.mxu0 0
  %273 = vmatpush.bf16.msra.mxu0 %v261
  %274 = vmatpush.bf16.msra.mxu0 %v260
  %275 = vmatmul.bf16.gmra.mxu0 %v265
  %v276 = vpop.f32.mrf.mxu0
  %v277 = vadd.f32 0.0, %v276
  %v278 = vpop.f32.mrf.mxu0
  %279 = vdwg.mxu0
  %v280 = vadd.f32 %v229, %v277
  %v281 = vtanh.pop %v280
  %v282 = vpack.c.bf16 %v281, %v281
  %v284 = vsel %vm206, %v282, 0
  %286 = vmatpush.bf16.msra.mxu0 0
  %287 = vmatpush.bf16.msra.mxu0 0
  %288 = vmatpush.bf16.msra.mxu0 0
  %289 = vmatpush.bf16.msra.mxu0 0
  %290 = vmatpush.bf16.msra.mxu0 0
  %291 = vmatpush.bf16.msra.mxu0 0
  %292 = vmatpush.bf16.msra.mxu0 %v261
  %293 = vmatpush.bf16.msra.mxu0 %v260
  %294 = vmatmul.bf16.gmra.mxu0 %v284
  %v295 = vpop.f32.mrf.mxu0
  %v296 = vadd.f32 0.0, %v295
  %v297 = vpop.f32.mrf.mxu0
  %298 = vdwg.mxu0
  %v299 = vadd.f32 %v231, %v296
  %v300 = vtanh.pop %v299
  %v301 = vpack.c.bf16 %v300, %v300
  %v303 = vsel %vm206, %v301, 0
  %305 = vmatpush.bf16.msra.mxu0 0
  %306 = vmatpush.bf16.msra.mxu0 0
  %307 = vmatpush.bf16.msra.mxu0 0
  %308 = vmatpush.bf16.msra.mxu0 0
  %309 = vmatpush.bf16.msra.mxu0 0
  %310 = vmatpush.bf16.msra.mxu0 0
  %311 = vmatpush.bf16.msra.mxu0 %v261
  %312 = vmatpush.bf16.msra.mxu0 %v260
  %313 = vmatmul.bf16.gmra.mxu0 %v303
  %v314 = vpop.f32.mrf.mxu0
  %v315 = vadd.f32 0.0, %v314
  %v316 = vpop.f32.mrf.mxu0
  %317 = vdwg.mxu0
  %v318 = vadd.f32 %v234, %v315
  %v319 = vtanh.pop %v318
  %v320 = vpack.c.bf16 %v319, %v319
  %v322 = vsel %vm206, %v320, 0
  %324 = vmatpush.bf16.msra.mxu0 0
  %325 = vmatpush.bf16.msra.mxu0 0
  %326 = vmatpush.bf16.msra.mxu0 0
  %327 = vmatpush.bf16.msra.mxu0 0
  %328 = vmatpush.bf16.msra.mxu0 0
  %329 = vmatpush.bf16.msra.mxu0 0
  %330 = vmatpush.bf16.msra.mxu0 %v261
  %331 = vmatpush.bf16.msra.mxu0 %v260
  %332 = vmatmul.bf16.gmra.mxu0 %v322
  %v333 = vpop.f32.mrf.mxu0
  %v334 = vadd.f32 0.0, %v333
  %v335 = vpop.f32.mrf.mxu0
  %336 = vdwg.mxu0
  %v337 = vadd.f32 %v236, %v334
  %v338 = vtanh.pop %v337
  %v339 = vpack.c.bf16 %v338, %v338
  %v341 = vsel %vm206, %v339, 0
  %343 = vmatpush.bf16.msra.mxu0 0
  %344 = vmatpush.bf16.msra.mxu0 0
  %345 = vmatpush.bf16.msra.mxu0 0
  %346 = vmatpush.bf16.msra.mxu0 0
  %347 = vmatpush.bf16.msra.mxu0 0
  %348 = vmatpush.bf16.msra.mxu0 0
  %349 = vmatpush.bf16.msra.mxu0 %v261
  %350 = vmatpush.bf16.msra.mxu0 %v260
  %351 = vmatmul.bf16.gmra.mxu0 %v341
  %v352 = vpop.f32.mrf.mxu0
  %v353 = vadd.f32 0.0, %v352
  %v354 = vpop.f32.mrf.mxu0
  %355 = vdwg.mxu0
  %v356 = vadd.f32 %v239, %v353
  %v357 = vtanh.pop %v356
  %v358 = vpack.c.bf16 %v357, %v357
  %v360 = vsel %vm206, %v358, 0
  %362 = vmatpush.bf16.msra.mxu0 0
  %363 = vmatpush.bf16.msra.mxu0 0
  %364 = vmatpush.bf16.msra.mxu0 0
  %365 = vmatpush.bf16.msra.mxu0 0
  %366 = vmatpush.bf16.msra.mxu0 0
  %367 = vmatpush.bf16.msra.mxu0 0
  %368 = vmatpush.bf16.msra.mxu0 %v261
  %369 = vmatpush.bf16.msra.mxu0 %v260
  %370 = vmatmul.bf16.gmra.mxu0 %v360
  %v371 = vpop.f32.mrf.mxu0
  %v372 = vadd.f32 0.0, %v371
  %v373 = vpop.f32.mrf.mxu0
  %374 = vdwg.mxu0
  %v375 = vadd.f32 %v241, %v372
  %v376 = vtanh.pop %v375
  %v377 = vpack.c.bf16 %v376, %v376
  %v379 = vsel %vm206, %v377, 0
  %381 = vmatpush.bf16.msra.mxu0 0
  %382 = vmatpush.bf16.msra.mxu0 0
  %383 = vmatpush.bf16.msra.mxu0 0
  %384 = vmatpush.bf16.msra.mxu0 0
  %385 = vmatpush.bf16.msra.mxu0 0
  %386 = vmatpush.bf16.msra.mxu0 0
  %387 = vmatpush.bf16.msra.mxu0 %v261
  %388 = vmatpush.bf16.msra.mxu0 %v260
  %389 = vmatmul.bf16.gmra.mxu0 %v379
  %v390 = vpop.f32.mrf.mxu0
  %v391 = vadd.f32 0.0, %v390
  %v392 = vpop.f32.mrf.mxu0
  %393 = vdwg.mxu0
  %v394 = vadd.f32 %v244, %v391
  %v395 = vtanh.pop %v394
  %v396 = vpack.c.bf16 %v395, %v395
  %v398 = vsel %vm206, %v396, 0
  %400 = vmatpush.bf16.msra.mxu0 0
  %401 = vmatpush.bf16.msra.mxu0 0
  %402 = vmatpush.bf16.msra.mxu0 0
  %403 = vmatpush.bf16.msra.mxu0 0
  %404 = vmatpush.bf16.msra.mxu0 0
  %405 = vmatpush.bf16.msra.mxu0 0
  %406 = vmatpush.bf16.msra.mxu0 %v261
  %407 = vmatpush.bf16.msra.mxu0 %v260
  %408 = vmatmul.bf16.gmra.mxu0 %v398
  %v409 = vpop.f32.mrf.mxu0
  %v410 = vadd.f32 0.0, %v409
  %v411 = vpop.f32.mrf.mxu0
  %412 = vdwg.mxu0
  %v413 = vadd.f32 %v246, %v410
  %v414 = vtanh.pop %v413
  %v415 = vpack.c.bf16 %v414, %v414
  %v416 = vld [vmem:[%s5] sm:$0xf]
  %v417 = vld [vmem:[%s5 + $0x4] sm:$0xf]
  %v418 = vld [vmem:[%s5 + $0x8] sm:$0xf]
  %v419 = vld [vmem:[%s5 + $0xc] sm:$0xf]
  %v420 = vld [vmem:[%s6] sm:$0x1]
  %v422 = vperm.slane %v420, 0
  %v428 = vunpack.c.l.b16 %v416
  %v429 = vunpack.c.l.b16 %v417
  %v430 = vunpack.c.l.b16 %v418
  %v431 = vunpack.c.l.b16 %v419
  %v432 = vpack.c.b16 %v429, %v428
  %v433 = vpack.c.b16 %v431, %v430
  %v437 = vsel %vm206, %v415, 0
  %439 = vmatpush.bf16.msra.mxu0 0
  %440 = vmatpush.bf16.msra.mxu0 0
  %441 = vmatpush.bf16.msra.mxu0 0
  %442 = vmatpush.bf16.msra.mxu0 0
  %443 = vmatpush.bf16.msra.mxu0 0
  %444 = vmatpush.bf16.msra.mxu0 0
  %445 = vmatpush.bf16.msra.mxu0 %v433
  %446 = vmatpush.bf16.msra.mxu0 %v432
  %447 = vmatmul.bf16.gmra.mxu0 %v437
  %v448 = vpop.f32.mrf.mxu0
  %v449 = vadd.f32 %v422, %v448
  %v450 = vpop.f32.mrf.mxu0
  %451 = vdwg.mxu0
  %452 = vst [vmem:[%s7] sm:$0xff] %v449
  // Predicated region
  $region30: #{torch_model_forward.1} parent=0 // pred_check
    _
  $region31: #{torch_model_forward.1} parent=0 // pred_check_branch
    %454 = sbr.rel (0) target = $region33
  $region32: #{torch_model_forward.1} parent=0 // pred_region
    _
  $region33: #{torch_model_forward.1} parent=0 // pred_fallthru
    _
  // Predicated region
  $region34: #{torch_model_forward.1} parent=0 // pred_check
    _
  $region35: #{torch_model_forward.1} parent=0 // pred_check_branch
    %456 = sbr.rel (0) target = $region37
  $region36: #{torch_model_forward.1} parent=0 // pred_region
    _
  $region37: #{torch_model_forward.1} parent=0 // pred_fallthru
    _

</llo_original>
